<compile_context>
chip_gen: v7x
topology: tpu7x:2x2x1
jax: 0.10.0
libtpu: 0.0.40
codegen_flags: <defaults>
</compile_context>

<pallas_src>
import functools

import numpy as np
import jax
import jax.numpy as jnp
from jax.experimental import pallas as pl
from jax.experimental.pallas import tpu as pltpu

NUM_POINTS = 30
_LANES = 128
_CHUNK_ROWS = 32          # inner-loop tile: (32,128) = one native uint8 tile, 4 f32 vregs/input
_MAX_BLOCK_ROWS = 4096    # (4096,128) f32 = 2 MiB per input per buffer
_MIN_BLOCK_ROWS = 32


def _round_up(x, m):
    return (x + m - 1) // m * m


# ----------------------------------------------------------------------------- #
# Pallas kernel: fused BCE partial-sum + binarization over one (block_rows,128)
# tile, streamed in (32,128) chunks.
# ----------------------------------------------------------------------------- #
def _bce_bin_kernel(n_valid, block_rows, n_chunks,
                    x_ref, t_ref, psum_ref, pbin_ref, tbin_ref):
    i = pl.program_id(0)
    block_base = i * (block_rows * _LANES)          # flat index of this block's first element

    # Loop-invariant local flat index of each element within a chunk (hoisted:
    # broadcast_in_dim is not CSE'd by JAX, so don't rebuild it per iteration).
    row_id = jax.lax.broadcasted_iota(jnp.int32, (_CHUNK_ROWS, _LANES), 0)
    lane_id = jax.lax.broadcasted_iota(jnp.int32, (_CHUNK_ROWS, _LANES), 1)
    local_idx = row_id * _LANES + lane_id

    psum_ref[...] = jnp.zeros_like(psum_ref)

    @pl.loop(0, n_chunks)
    def _(c):
        r0 = pl.multiple_of(c * _CHUNK_ROWS, _CHUNK_ROWS)
        # Upcast in-register; callers may stream narrower dtypes (e.g. bf16)
        # without a wrapper-side full-size f32 copy.
        x = x_ref[pl.ds(r0, _CHUNK_ROWS), :].astype(jnp.float32)
        t = t_ref[pl.ds(r0, _CHUNK_ROWS), :].astype(jnp.float32)

        # Fused binarization: sigmoid(x) > 0.5  <=>  x > 0 (exact).
        # (32,128) uint8 chunk == one native u8 tile, aligned -> unmasked store.
        pbin_ref[pl.ds(r0, _CHUNK_ROWS), :] = (x > 0.0).astype(jnp.uint8)
        tbin_ref[pl.ds(r0, _CHUNK_ROWS), :] = (t > 0.5).astype(jnp.uint8)

        # Numerically stable BCE with logits: max(x,0) - x*t + log1p(exp(-|x|)).
        elem = jnp.maximum(x, 0.0) - x * t + jnp.log1p(jnp.exp(-jnp.abs(x)))
        # Mask padded / partial-block garbage (n_valid is a compile-time const).
        gidx = block_base + c * (_CHUNK_ROWS * _LANES) + local_idx
        elem = jnp.where(gidx < n_valid, elem, 0.0)

        # Deferred reduction: fold the chunk into the resident (8,128) partial.
        psum_ref[...] = psum_ref[...] + elem.reshape(_CHUNK_ROWS // 8, 8, _LANES).sum(axis=0)


@jax.jit
def _device_bce_and_binarize(pred_mask, target_mask):
    """Returns (bce_mean f32 scalar, pred_bin (rows,128) u8, targ_bin (rows,128) u8)."""
    n_valid = int(np.prod(pred_mask.shape))
    x = pred_mask.reshape(-1)
    t = target_mask.reshape(-1)

    # Only round to 128 lanes (and a one-tile floor for tiny inputs); the tail
    # is masked in-kernel, so no full-size jnp.pad copy on the common path.
    n_total = max(_round_up(n_valid, _LANES), _MIN_BLOCK_ROWS * _LANES)
    if n_total != n_valid:
        pad = n_total - n_valid           # rare fallback: <=127 elems or tiny input
        x = jnp.pad(x, (0, pad))
        t = jnp.pad(t, (0, pad))
    rows = n_total // _LANES
    xp = x.reshape(rows, _LANES)
    tp = t.reshape(rows, _LANES)

    # Block choice: >=2 blocks whenever possible (v7x megacore), capped so the
    # double-buffered footprint (2 f32 in + 2 u8 out) stays ~10 MiB.
    block_rows = max(_MIN_BLOCK_ROWS,
                     min(_MAX_BLOCK_ROWS, _round_up(pl.cdiv(rows, 2), _CHUNK_ROWS)))
    n_blocks = pl.cdiv(rows, block_rows)
    n_chunks = block_rows // _CHUNK_ROWS

    kernel = functools.partial(_bce_bin_kernel, n_valid, block_rows, n_chunks)

    in_spec = pl.BlockSpec((block_rows, _LANES), lambda i: (i, 0))
    out_specs = [
        pl.BlockSpec((8, _LANES), lambda i: (i, 0)),             # BCE partial sums
        pl.BlockSpec((block_rows, _LANES), lambda i: (i, 0)),    # pred binarized (u8)
        pl.BlockSpec((block_rows, _LANES), lambda i: (i, 0)),    # target binarized (u8)
    ]
    out_shapes = [
        jax.ShapeDtypeStruct((n_blocks * 8, _LANES), jnp.float32),
        jax.ShapeDtypeStruct((rows, _LANES), jnp.uint8),
        jax.ShapeDtypeStruct((rows, _LANES), jnp.uint8),
    ]

    psum, pbin, tbin = pl.pallas_call(
        kernel,
        out_shape=out_shapes,
        grid_spec=pltpu.PrefetchScalarGridSpec(
            num_scalar_prefetch=0,
            grid=(n_blocks,),
            in_specs=[in_spec, in_spec],
            out_specs=out_specs,
        ),
        compiler_params=pltpu.CompilerParams(
            dimension_semantics=("parallel",),
            vmem_limit_bytes=32 * 1024 * 1024,
        ),
    )(xp, tp)

    bce_mean = jnp.sum(psum) / jnp.float32(n_valid)
    return bce_mean, pbin, tbin


# ----------------------------------------------------------------------------- #
# Host-side (NumPy) contour machinery — mirrors the .cpu().numpy() path of the
# original PyTorch module.
# ----------------------------------------------------------------------------- #
def resample_contour(contour, num_points):
    contour_length = contour.shape[0]
    indices = np.linspace(0, contour_length - 1, num_points, dtype=int)
    return contour[indices]


def _largest_component(mask):
    """Largest 8-connected component of a binary HxW mask (analog of max-area contour)."""
    H, W = mask.shape
    visited = np.zeros((H, W), dtype=bool)
    best, best_size = None, 0
    for i in range(H):
        for j in range(W):
            if mask[i, j] and not visited[i, j]:
                stack = [(i, j)]
                visited[i, j] = True
                comp = []
                while stack:
                    y, x = stack.pop()
                    comp.append((y, x))
                    for dy in (-1, 0, 1):
                        for dx in (-1, 0, 1):
                            ny, nx = y + dy, x + dx
                            if 0 <= ny < H and 0 <= nx < W and mask[ny, nx] and not visited[ny, nx]:
                                visited[ny, nx] = True
                                stack.append((ny, nx))
                if len(comp) > best_size:
                    best_size, best = len(comp), comp
    out = np.zeros((H, W), dtype=bool)
    if best:
        ys, xs = zip(*best)
        out[list(ys), list(xs)] = True
    return out


def _contour_points(comp):
    """Boundary pixels of a component as (x, y) points, ordered by angle around centroid."""
    padded = np.pad(comp, 1)
    interior = (padded[:-2, 1:-1] & padded[2:, 1:-1] &
                padded[1:-1, :-2] & padded[1:-1, 2:])
    boundary = comp & ~interior
    ys, xs = np.nonzero(boundary)
    if ys.size == 0:
        return np.zeros((1, 2), dtype=np.float32)
    cy, cx = ys.mean(), xs.mean()
    order = np.argsort(np.arctan2(ys - cy, xs - cx))
    return np.stack([xs[order], ys[order]], axis=1).astype(np.float32)


def shape_aware_loss(pred_mask, target_mask, num_points=NUM_POINTS):
    """Forward pass of ShapeAwareLoss."""
    shape = tuple(pred_mask.shape)
    n_valid = int(np.prod(shape))

    bce_mean, pbin, tbin = _device_bce_and_binarize(pred_mask, target_mask)
    bce_mean, pbin, tbin = jax.block_until_ready((bce_mean, pbin, tbin))
    bce = float(np.asarray(bce_mean))

    # uint8 D2H copies (1 B/elem); slice off the in-kernel-masked tail and
    # restore the original layout (views, no host copies).
    pred_bin_np = np.asarray(pbin).reshape(-1)[:n_valid].reshape(shape).astype(bool)
    targ_bin_np = np.asarray(tbin).reshape(-1)[:n_valid].reshape(shape).astype(bool)

    B = shape[0]
    batch_loss = 0.0
    for b in range(B):
        p = np.squeeze(pred_bin_np[b])
        t = np.squeeze(targ_bin_np[b])
        p_contour = _contour_points(_largest_component(p))
        t_contour = _contour_points(_largest_component(t))
        p_rs = resample_contour(p_contour, num_points)
        t_rs = resample_contour(t_contour, num_points)
        distance = np.linalg.norm(p_rs - t_rs)
        batch_loss += bce * distance
    return batch_loss / B


# ----------------------------------------------------------------------------- #
if __name__ == "__main__":
    B, C, H, W = 2, 1, 64, 64
    key = jax.random.PRNGKey(0)

    # Target: axis-aligned squares (so contours exist, as the module assumes).
    target = np.zeros((B, C, H, W), dtype=np.float32)
    target[0, 0, 16:48, 16:48] = 1.0
    target[1, 0, 12:44, 20:52] = 1.0
    target_mask = jnp.asarray(target)

    # Prediction logits: slightly shifted squares + small deterministic noise.
    logits = np.full((B, C, H, W), -6.0, dtype=np.float32)
    logits[0, 0, 18:50, 18:50] = 6.0
    logits[1, 0, 12:44, 18:50] = 6.0
    noise = 0.1 * jax.random.normal(key, (B, C, H, W), dtype=jnp.float32)
    pred_mask = jnp.asarray(logits) + noise

    # Run the fused Pallas kernel once and block on its results.
    dev_out = _device_bce_and_binarize(pred_mask, target_mask)
    jax.block_until_ready(dev_out)

    loss = shape_aware_loss(pred_mask, target_mask, num_points=NUM_POINTS)
    assert np.isfinite(loss)
    print("KERNEL_OK")
</pallas_src>

<mosaic_0001>
module attributes {stable_mosaic.version = 11 : i64} {
  func.func @_bce_bin_kernel(%arg0: i32, %arg1: memref<32x128xf32, #tpu.memory_space<vmem>>, %arg2: memref<32x128xf32, #tpu.memory_space<vmem>>, %arg3: memref<8x128xf32, #tpu.memory_space<vmem>>, %arg4: memref<32x128xi8, #tpu.memory_space<vmem>>, %arg5: memref<32x128xi8, #tpu.memory_space<vmem>>) attributes {dimension_semantics = [#tpu.dimension_semantics<parallel>], iteration_bounds = array<i64: 2>, scalar_prefetch = 0 : i64, scratch_operands = 0 : i64, tpu.core_type = #tpu.core_type<tc>, window_params = [{transform_indices = @transform_0, window_bounds = array<i64: 32, 128>}, {transform_indices = @transform_1, window_bounds = array<i64: 32, 128>}, {transform_indices = @transform_2, window_bounds = array<i64: 8, 128>}, {transform_indices = @transform_3, window_bounds = array<i64: 32, 128>}, {transform_indices = @transform_4, window_bounds = array<i64: 32, 128>}]} {
    %c4096_i32 = arith.constant 4096 : i32
    %0 = arith.muli %arg0, %c4096_i32 : i32
    %1 = tpu.iota {dimensions = array<i32: 0>} : vector<32x128xi32>
    %2 = tpu.iota {dimensions = array<i32: 1>} : vector<32x128xi32>
    %c128_i32 = arith.constant 128 : i32
    %3 = vector.broadcast %c128_i32 : i32 to vector<32x128xi32>
    %4 = arith.muli %1, %3 : vector<32x128xi32>
    %5 = arith.addi %4, %2 : vector<32x128xi32>
    %cst = arith.constant 0.000000e+00 : f32
    %6 = vector.broadcast %cst : f32 to vector<8x128xf32>
    %c0 = arith.constant 0 : index
    %c0_0 = arith.constant 0 : index
    %7 = vector.load %arg3[%c0, %c0_0] : memref<8x128xf32, #tpu.memory_space<vmem>>, vector<8x128xf32>
    tpu.vector_store %arg3[%c0, %c0_0], %6 {strides = array<i32>} : memref<8x128xf32, #tpu.memory_space<vmem>>, vector<8x128xf32>,
    %c0_i32 = arith.constant 0 : i32
    %c1_i32 = arith.constant 1 : i32
    %8 = arith.muli %c0_i32, %c1_i32 : i32
    %c0_i32_1 = arith.constant 0 : i32
    %9 = arith.addi %c0_i32_1, %8 : i32
    %c32_i32 = arith.constant 32 : i32
    %10 = arith.muli %9, %c32_i32 : i32
    %11 = tpu.assume_multiple %10, 32 : i32
    %12 = arith.index_cast %11 : i32 to index
    %c0_2 = arith.constant 0 : index
    %13 = vector.load %arg1[%12, %c0_2] : memref<32x128xf32, #tpu.memory_space<vmem>>, vector<32x128xf32>
    %14 = arith.index_cast %11 : i32 to index
    %c0_3 = arith.constant 0 : index
    %15 = vector.load %arg2[%14, %c0_3] : memref<32x128xf32, #tpu.memory_space<vmem>>, vector<32x128xf32>
    %cst_4 = arith.constant 0.000000e+00 : f32
    %16 = vector.broadcast %cst_4 : f32 to vector<32x128xf32>
    %17 = arith.cmpf ogt, %13, %16 : vector<32x128xf32>
    %18 = arith.extui %17 : vector<32x128xi1> to vector<32x128xi8>
    %19 = arith.index_cast %11 : i32 to index
    %c0_5 = arith.constant 0 : index
    %20 = vector.load %arg4[%19, %c0_5] : memref<32x128xi8, #tpu.memory_space<vmem>>, vector<32x128xi8>
    tpu.vector_store %arg4[%19, %c0_5], %18 {strides = array<i32>} : memref<32x128xi8, #tpu.memory_space<vmem>>, vector<32x128xi8>,
    %cst_6 = arith.constant 5.000000e-01 : f32
    %21 = vector.broadcast %cst_6 : f32 to vector<32x128xf32>
    %22 = arith.cmpf ogt, %15, %21 : vector<32x128xf32>
    %23 = arith.extui %22 : vector<32x128xi1> to vector<32x128xi8>
    %24 = arith.index_cast %11 : i32 to index
    %c0_7 = arith.constant 0 : index
    %25 = vector.load %arg5[%24, %c0_7] : memref<32x128xi8, #tpu.memory_space<vmem>>, vector<32x128xi8>
    tpu.vector_store %arg5[%24, %c0_7], %23 {strides = array<i32>} : memref<32x128xi8, #tpu.memory_space<vmem>>, vector<32x128xi8>,
    %cst_8 = arith.constant 0.000000e+00 : f32
    %26 = vector.broadcast %cst_8 : f32 to vector<32x128xf32>
    %27 = arith.maximumf %13, %26 : vector<32x128xf32>
    %28 = arith.mulf %13, %15 : vector<32x128xf32>
    %29 = arith.subf %27, %28 : vector<32x128xf32>
    %30 = math.absf %13 : vector<32x128xf32>
    %cst_9 = arith.constant 0.000000e+00 : f32
    %31 = vector.broadcast %cst_9 : f32 to vector<32x128xf32>
    %32 = arith.subf %31, %30 : vector<32x128xf32>
    %33 = math.exp %32 : vector<32x128xf32>
    %34 = math.log1p %33 : vector<32x128xf32>
    %35 = arith.addf %29, %34 : vector<32x128xf32>
    %c4096_i32_10 = arith.constant 4096 : i32
    %36 = arith.muli %9, %c4096_i32_10 : i32
    %37 = arith.addi %0, %36 : i32
    %38 = vector.broadcast %37 : i32 to vector<32x128xi32>
    %39 = arith.addi %38, %5 : vector<32x128xi32>
    %c8192_i32 = arith.constant 8192 : i32
    %40 = vector.broadcast %c8192_i32 : i32 to vector<32x128xi32>
    %41 = arith.cmpi slt, %39, %40 : vector<32x128xi32>
    %cst_11 = arith.constant 0.000000e+00 : f32
    %42 = vector.broadcast %cst_11 : f32 to vector<32x128xf32>
    %43 = arith.select %41, %35, %42 : vector<32x128xi1>, vector<32x128xf32>
    %c0_12 = arith.constant 0 : index
    %c0_13 = arith.constant 0 : index
    %44 = vector.load %arg3[%c0_12, %c0_13] : memref<8x128xf32, #tpu.memory_space<vmem>>, vector<8x128xf32>
    %45 = vector.shape_cast %43 : vector<32x128xf32> to vector<4x8x128xf32>
    %cst_14 = arith.constant dense<0.000000e+00> : vector<8x128xf32>
    %46 = vector.multi_reduction <add>, %45, %cst_14 [0] : vector<4x8x128xf32> to vector<8x128xf32>
    %47 = arith.addf %44, %46 : vector<8x128xf32>
    %c0_15 = arith.constant 0 : index
    %c0_16 = arith.constant 0 : index
    %48 = vector.load %arg3[%c0_15, %c0_16] : memref<8x128xf32, #tpu.memory_space<vmem>>, vector<8x128xf32>
    tpu.vector_store %arg3[%c0_15, %c0_16], %47 {strides = array<i32>} : memref<8x128xf32, #tpu.memory_space<vmem>>, vector<8x128xf32>,
    %c1_i32_17 = arith.constant 1 : i32
    return
  }
  func.func @transform_0(%arg0: i32) -> (i32, i32) {
    %c0_i32 = arith.constant 0 : i32
    %c0_i32_0 = arith.constant 0 : i32
    return %arg0, %c0_i32 : i32, i32
  }
  func.func @transform_1(%arg0: i32) -> (i32, i32) {
    %c0_i32 = arith.constant 0 : i32
    %c0_i32_0 = arith.constant 0 : i32
    return %arg0, %c0_i32 : i32, i32
  }
  func.func @transform_2(%arg0: i32) -> (i32, i32) {
    %c0_i32 = arith.constant 0 : i32
    %c0_i32_0 = arith.constant 0 : i32
    return %arg0, %c0_i32 : i32, i32
  }
  func.func @transform_3(%arg0: i32) -> (i32, i32) {
    %c0_i32 = arith.constant 0 : i32
    %c0_i32_0 = arith.constant 0 : i32
    return %arg0, %c0_i32 : i32, i32
  }
  func.func @transform_4(%arg0: i32) -> (i32, i32) {
    %c0_i32 = arith.constant 0 : i32
    %c0_i32_0 = arith.constant 0 : i32
    return %arg0, %c0_i32 : i32, i32
  }
}

</mosaic_0001>

<llo_original>
// kernel: _device_bce_and_binarize.1
$region0: #{_device_bce_and_binarize.1}
  #allocation0 [shape = 'u32[]', space=smem, size = 0x4, offset = 0x4, fixed_abs, tag = 'smem constant byte address 0x4 - core index']
  #allocation1 [shape = 'u32[144,128]{1,0:T(1,128)}', space=vmem, size = 0x12000, scoped, tag = 'internal scratch']
  %s0 = inlined_call_operand.vmem [shape: f32[64,128], index: 0, kind: input, shape index: {}]
  %s1 = inlined_call_operand.vmem [shape: f32[64,128], index: 1, kind: input, shape index: {}]
  %s2 = inlined_call_operand.vmem [shape: f32[16,128], index: 2, kind: output, shape index: {0}]
  %s3 = inlined_call_operand.hbm [shape: u8[64,128], index: 3, kind: output, shape index: {1}]
  %s4 = inlined_call_operand.hbm [shape: u8[64,128], index: 4, kind: output, shape index: {2}]
  %5 = xla_tuple %s2, %s3, %s4
  %s6 = sld [smem:[#allocation0]]
  $region57: #{_device_bce_and_binarize.1} parent=0
    _
  %s8 = ssub.s32 1, %s6
  %s9 = scalar_select 0, %s8, %s6
  $region1: #{_device_bce_and_binarize.1} parent=0
    #allocation2 [shape = 'u8[8192]{0}', space=vmem, size = 0x2000, scoped, tag = 'output window, operand 1']
    #allocation3 [shape = 's32[2]{0}', space=sflag, size = 0x8, scoped, tag = 'scoped memory for _device_bce_and_binarize.1']
    #allocation4 [shape = 'u8[8192]{0}', space=vmem, size = 0x2000, scoped, tag = 'output window, operand 2']
    #allocation5 [shape = 's32[2]{0}', space=sflag, size = 0x8, scoped, tag = 'scoped memory for _device_bce_and_binarize.1']
    %10 = vsyncpa [#allocation3], 0
    %s11 = scalar_lea.sflag [#allocation3], 1
    %12 = vsyncpa %s11, 0
    %13 = vsyncpa [#allocation5], 0
    %s14 = scalar_lea.sflag [#allocation5], 1
    %15 = vsyncpa %s14, 0
    loop: start=0, step=1, limit=4
    $region2: #{_device_bce_and_binarize.1} parent=1 // loop_pre_header
      _
    $region3: #{_device_bce_and_binarize.1} parent=1 // loop_header
      %s17 = sphi 0, %s21
      %p18 = scmp.ge.s32.totalorder %s17, 4
      %s27 = sphi 0, %s29
      %s30 = sphi 0, %s27
      %s31 = sphi 0, %s30
      %s47 = sphi 0, %s31
      %s53 = sphi 0, %s55
      %s56 = sphi 0, %s53
      %s57 = sphi 0, %s56
      %s73 = sphi 0, %s57
      %s79 = sphi 0, %s81
      %s82 = sphi 0, %s79
      %s83 = sphi 0, %s82
      %s99 = sphi 0, %s83
      %s105 = sphi 0, %s107
      %s108 = sphi 0, %s105
      %s109 = sphi 0, %s108
      %s125 = sphi 0, %s109
      %s131 = sphi 0, %s133
      %s134 = sphi 0, %s131
      %s135 = sphi 0, %s134
      %s151 = sphi 0, %s135
    $region4: #{_device_bce_and_binarize.1} parent=1 // loop_header_branch
      %20 = sbr.rel (%p18) target = $region8
    $region5: #{_device_bce_and_binarize.1} parent=1 // loop_body
      %s22 = ssub.s32 %s17, 1
      %s23 = ssub.s32 %s17, 2
      %s24 = sadd.s32 %s17, 1
      %s25 = ssub.s32 %s17, %s24
      %p26 = scmp.eq.s32.totalorder %s25, 0
      %s28 = sadd.s32 %s27, 1
      %s29 = scalar_select %p26, %s27, %s28
      %p32 = pneg %p26
      %p33 = scmp.eq.s32.totalorder %s17, 1
      %p34 = por %p32, %p33
      %p35 = scmp.ne.s32.totalorder %s27, %s30
      %p36 = scmp.eq.s32.totalorder %s17, 0
      %p37 = por %p35, %p36
      %p38 = scmp.ne.s32.totalorder %s27, %s30
      %p39 = scmp.eq.s32.totalorder %s22, 1
      %p40 = por %p38, %p39
      %p41 = scmp.ne.s32.totalorder %s30, %s31
      %p42 = scmp.eq.s32.totalorder %s22, 0
      %p43 = por %p41, %p42
      %p44 = scmp.ne.s32.totalorder %s30, %s31
      %p45 = scmp.eq.s32.totalorder %s23, 1
      %p46 = por %p44, %p45
      %p48 = scmp.ne.s32.totalorder %s31, %s47
      %p49 = scmp.eq.s32.totalorder %s23, 0
      %p50 = por %p48, %p49
      %s51 = ssub.s32 %s17, %s24
      %p52 = scmp.eq.s32.totalorder %s51, 0
      %s54 = sadd.s32 %s53, 1
      %s55 = scalar_select %p52, %s53, %s54
      %p58 = pneg %p52
      %p59 = scmp.eq.s32.totalorder %s17, 1
      %p60 = por %p58, %p59
      %p61 = scmp.ne.s32.totalorder %s53, %s56
      %p62 = scmp.eq.s32.totalorder %s17, 0
      %p63 = por %p61, %p62
      %p64 = scmp.ne.s32.totalorder %s53, %s56
      %p65 = scmp.eq.s32.totalorder %s22, 1
      %p66 = por %p64, %p65
      %p67 = scmp.ne.s32.totalorder %s56, %s57
      %p68 = scmp.eq.s32.totalorder %s22, 0
      %p69 = por %p67, %p68
      %p70 = scmp.ne.s32.totalorder %s56, %s57
      %p71 = scmp.eq.s32.totalorder %s23, 1
      %p72 = por %p70, %p71
      %p74 = scmp.ne.s32.totalorder %s57, %s73
      %p75 = scmp.eq.s32.totalorder %s23, 0
      %p76 = por %p74, %p75
      %s77 = ssub.s32 %s17, %s24
      %p78 = scmp.eq.s32.totalorder %s77, 0
      %s80 = sadd.s32 %s79, 1
      %s81 = scalar_select %p78, %s79, %s80
      %p84 = pneg %p78
      %p85 = scmp.eq.s32.totalorder %s17, 1
      %p86 = por %p84, %p85
      %p87 = scmp.ne.s32.totalorder %s79, %s82
      %p88 = scmp.eq.s32.totalorder %s17, 0
      %p89 = por %p87, %p88
      %p90 = scmp.ne.s32.totalorder %s79, %s82
      %p91 = scmp.eq.s32.totalorder %s22, 1
      %p92 = por %p90, %p91
      %p93 = scmp.ne.s32.totalorder %s82, %s83
      %p94 = scmp.eq.s32.totalorder %s22, 0
      %p95 = por %p93, %p94
      %p96 = scmp.ne.s32.totalorder %s82, %s83
      %p97 = scmp.eq.s32.totalorder %s23, 1
      %p98 = por %p96, %p97
      %p100 = scmp.ne.s32.totalorder %s83, %s99
      %p101 = scmp.eq.s32.totalorder %s23, 0
      %p102 = por %p100, %p101
      %s103 = ssub.s32 %s17, %s24
      %p104 = scmp.eq.s32.totalorder %s103, 0
      %s106 = sadd.s32 %s105, 1
      %s107 = scalar_select %p104, %s105, %s106
      %p110 = pneg %p104
      %p111 = scmp.eq.s32.totalorder %s17, 1
      %p112 = por %p110, %p111
      %p113 = scmp.ne.s32.totalorder %s105, %s108
      %p114 = scmp.eq.s32.totalorder %s17, 0
      %p115 = por %p113, %p114
      %p116 = scmp.ne.s32.totalorder %s105, %s108
      %p117 = scmp.eq.s32.totalorder %s22, 1
      %p118 = por %p116, %p117
      %p119 = scmp.ne.s32.totalorder %s108, %s109
      %p120 = scmp.eq.s32.totalorder %s22, 0
      %p121 = por %p119, %p120
      %p122 = scmp.ne.s32.totalorder %s108, %s109
      %p123 = scmp.eq.s32.totalorder %s23, 1
      %p124 = por %p122, %p123
      %p126 = scmp.ne.s32.totalorder %s109, %s125
      %p127 = scmp.eq.s32.totalorder %s23, 0
      %p128 = por %p126, %p127
      %s129 = ssub.s32 %s17, %s24
      %p130 = scmp.eq.s32.totalorder %s129, 0
      %s132 = sadd.s32 %s131, 1
      %s133 = scalar_select %p130, %s131, %s132
      %p136 = pneg %p130
      %p137 = scmp.eq.s32.totalorder %s17, 1
      %p138 = por %p136, %p137
      %p139 = scmp.ne.s32.totalorder %s131, %s134
      %p140 = scmp.eq.s32.totalorder %s17, 0
      %p141 = por %p139, %p140
      %p142 = scmp.ne.s32.totalorder %s131, %s134
      %p143 = scmp.eq.s32.totalorder %s22, 1
      %p144 = por %p142, %p143
      %p145 = scmp.ne.s32.totalorder %s134, %s135
      %p146 = scmp.eq.s32.totalorder %s22, 0
      %p147 = por %p145, %p146
      %p148 = scmp.ne.s32.totalorder %s134, %s135
      %p149 = scmp.eq.s32.totalorder %s23, 1
      %p150 = por %p148, %p149
      %p152 = scmp.ne.s32.totalorder %s135, %s151
      %p153 = scmp.eq.s32.totalorder %s23, 0
      %p154 = por %p152, %p153
      %p155 = scmp.le.s32.totalorder 1, %s17
      %p156 = scmp.lt.s32.totalorder %s17, 3
      %p157 = pnand %p155, %p156
      %p158 = pneg %p157
      // Predicated region
      $region9: #{_device_bce_and_binarize.1} parent=5 // pred_check
        _
      $region10: #{_device_bce_and_binarize.1} parent=5 // pred_check_branch
        %160 = sbr.rel (%p157) target = $region12
      $region11: #{_device_bce_and_binarize.1} parent=5 // pred_region
        %s161 = ssub.s32 %s17, 1
      $region12: #{_device_bce_and_binarize.1} parent=5 // pred_fallthru
        _
      %p162 = scmp.lt.s32.totalorder %s17, 2
      // Predicated region
      $region13: #{_device_bce_and_binarize.1} parent=5 // pred_check
        %p163 = pneg %p162
      $region14: #{_device_bce_and_binarize.1} parent=5 // pred_check_branch
        %165 = sbr.rel (%p163) target = $region16
      $region15: #{_device_bce_and_binarize.1} parent=5 // pred_region
        // Predicated region
        $region17: #{_device_bce_and_binarize.1} parent=15 // pred_check
          %p166 = pneg %p37
        $region18: #{_device_bce_and_binarize.1} parent=15 // pred_check_branch
          %168 = sbr.rel (%p166) target = $region20
        $region19: #{_device_bce_and_binarize.1} parent=15 // pred_region
          %s169 = smul.u32 4, %s17
          %p170 = scmp.lt.s32.totalorder %s169, 7
          %s171 = scalar_select %p170, %s169, 7
          %s172 = smul.addr %s171, 8
          %s173 = scalar_lea.vmem %s0, %s172
          %s174 = smul.u32 4, %s17
        $region20: #{_device_bce_and_binarize.1} parent=15 // pred_fallthru
          _
        // Predicated region
        $region21: #{_device_bce_and_binarize.1} parent=15 // pred_check
          %p175 = pneg %p63
        $region22: #{_device_bce_and_binarize.1} parent=15 // pred_check_branch
          %177 = sbr.rel (%p175) target = $region24
        $region23: #{_device_bce_and_binarize.1} parent=15 // pred_region
          %s178 = smul.u32 4, %s17
          %p179 = scmp.lt.s32.totalorder %s178, 7
          %s180 = scalar_select %p179, %s178, 7
          %s181 = smul.addr %s180, 8
          %s182 = scalar_lea.vmem %s1, %s181
          %s183 = smul.u32 4, %s17
        $region24: #{_device_bce_and_binarize.1} parent=15 // pred_fallthru
          _
      $region16: #{_device_bce_and_binarize.1} parent=5 // pred_fallthru
        _
      %p184 = scmp.le.s32.totalorder 1, %s17
      %p185 = scmp.lt.s32.totalorder %s17, 3
      %p186 = pnand %p184, %p185
      %p187 = pneg %p186
      // Predicated region
      $region25: #{_device_bce_and_binarize.1} parent=5 // pred_check
        _
      $region26: #{_device_bce_and_binarize.1} parent=5 // pred_check_branch
        %189 = sbr.rel (%p186) target = $region28
      $region27: #{_device_bce_and_binarize.1} parent=5 // pred_region
        %s190 = ssub.s32 %s17, 1
        %s191 = smul.u32 4, %s22
        %p192 = scmp.lt.s32.totalorder %s191, 7
        %s193 = scalar_select %p192, %s191, 7
        %s194 = smul.addr %s193, 8
        %s195 = scalar_lea.vmem %s0, %s194
        %p196 = pneg %p43
        %p197 = pneg %p40
        %s198 = smul.u32 4, %s22
        %p199 = scmp.lt.s32.totalorder %s198, 7
        %s200 = scalar_select %p199, %s198, 7
        %s201 = smul.addr %s200, 8
        %s202 = scalar_lea.vmem %s1, %s201
        %p203 = pneg %p69
        %p204 = pneg %p66
        %p205 = pneg %p95
        %p206 = pneg %p92
        %p207 = scmp.lt.s32.totalorder %s22, 1
        %s208 = scalar_select %p207, %s22, 1
        %s209 = smul.addr %s208, 8
        %s210 = scalar_lea.vmem %s2, %s209
        %p211 = pneg %p121
        %p212 = pneg %p118
        %s213 = sand.u32 %s108, 1
        %s214 = scalar_lea.sflag [#allocation3], %s213
        %s215 = sand.u32 %s108, 1
        %s216 = smul.addr %s215, 8
        %s217 = scalar_lea.vmem [#allocation2], %s216
        %p218 = pneg %p147
        %p219 = pneg %p144
        %s220 = sand.u32 %s134, 1
        %s221 = scalar_lea.sflag [#allocation5], %s220
        %s222 = sand.u32 %s134, 1
        %s223 = smul.addr %s222, 8
        %s224 = scalar_lea.vmem [#allocation4], %s223
        %s225 = smul.u32 4, %s22
        %p226 = scmp.lt.s32.totalorder %s225, 7
        %s227 = scalar_select %p226, %s225, 7
        %s228 = smul.addr %s227, 8
        %s229 = scalar_lea.vmem %s0, %s228
        %s230 = smul.u32 4, %s22
        %s231 = smul.u32 4, %s22
        %p232 = scmp.lt.s32.totalorder %s231, 7
        %s233 = scalar_select %p232, %s231, 7
        %s234 = smul.addr %s233, 8
        %s235 = scalar_lea.vmem %s1, %s234
        %s236 = smul.u32 4, %s22
        %p237 = scmp.lt.s32.totalorder %s22, 1
        %s238 = scalar_select %p237, %s22, 1
        %s239 = smul.addr %s238, 8
        %s240 = scalar_lea.vmem %s2, %s239
        %s243 = smul.u32 %s22, 4096
        %v244 = vlaneseq
        %v245 = vshrl.u32 %v244, 7
        %v246 = vadd.s32 %v245, 8
        %v247 = vadd.s32 %v245, 16
        %v248 = vadd.s32 %v245, 24
        %v249 = vlaneseq
        %v250 = vand.u32 %v249, 127
        %v251 = vmul.u32 %v245, 128
        %v252 = vmul.u32 %v246, 128
        %v253 = vmul.u32 %v247, 128
        %v254 = vmul.u32 %v248, 128
        %v255 = vadd.s32 %v251, %v250
        %v256 = vadd.s32 %v252, %v250
        %v257 = vadd.s32 %v253, %v250
        %v258 = vadd.s32 %v254, %v250
        %259 = vst [vmem:[%s240] sm:$0xff] 0.0
        %v260 = vld [vmem:[%s229] sm:$0xff]
        %v261 = vld [vmem:[%s229 + $0x8] sm:$0xff]
        %v262 = vld [vmem:[%s229 + $0x10] sm:$0xff]
        %v263 = vld [vmem:[%s229 + $0x18] sm:$0xff]
        %v264 = vld [vmem:[%s235] sm:$0xff]
        %v265 = vld [vmem:[%s235 + $0x8] sm:$0xff]
        %v266 = vld [vmem:[%s235 + $0x10] sm:$0xff]
        %v267 = vld [vmem:[%s235 + $0x18] sm:$0xff]
        %vm268 = vcmp.gt.f32.partialorder %v260, 0.0
        %vm269 = vcmp.gt.f32.partialorder %v261, 0.0
        %vm270 = vcmp.gt.f32.partialorder %v262, 0.0
        %vm271 = vcmp.gt.f32.partialorder %v263, 0.0
        %vm272 = vmpackc.low %vm269, %vm268
        %vm273 = vmpackc.low %vm271, %vm270
        %vm274 = vmpackc.even %vm273, %vm272
        %v275 = vsel %vm274, 16843009, 0
        %276 = vst [vmem:[%s217] sm:$0xff] %v275
        %vm277 = vcmp.gt.f32.partialorder %v264, 0.5
        %vm278 = vcmp.gt.f32.partialorder %v265, 0.5
        %vm279 = vcmp.gt.f32.partialorder %v266, 0.5
        %vm280 = vcmp.gt.f32.partialorder %v267, 0.5
        %vm281 = vmpackc.low %vm278, %vm277
        %vm282 = vmpackc.low %vm280, %vm279
        %vm283 = vmpackc.even %vm282, %vm281
        %v284 = vsel %vm283, 16843009, 0
        %285 = vst [vmem:[%s224] sm:$0xff] %v284
        %v286 = vmax.f32 %v260, 0.0
        %v287 = vmax.f32 %v261, 0.0
        %v288 = vmax.f32 %v262, 0.0
        %v289 = vmax.f32 %v263, 0.0
        %v290 = vmul.f32 %v260, %v264
        %v291 = vmul.f32 %v261, %v265
        %v292 = vmul.f32 %v262, %v266
        %v293 = vmul.f32 %v263, %v267
        %v294 = vsub.f32 %v286, %v290
        %v295 = vsub.f32 %v287, %v291
        %v296 = vsub.f32 %v288, %v292
        %v297 = vsub.f32 %v289, %v293
        %v298 = vand.u32 2147483647, %v260
        %v299 = vand.u32 2147483647, %v261
        %v300 = vand.u32 2147483647, %v262
        %v301 = vand.u32 2147483647, %v263
        %v302 = vsub.f32 0.0, %v298
        %v303 = vsub.f32 0.0, %v299
        %v304 = vsub.f32 0.0, %v300
        %v305 = vsub.f32 0.0, %v301
        %v306 = vmul.f32 %v302, 1.442695
        %v307 = vpow.pop %v306
        %v308 = vmul.f32 %v303, 1.442695
        %v309 = vpow.pop %v308
        %v310 = vmul.f32 %v304, 1.442695
        %v311 = vpow.pop %v310
        %v312 = vmul.f32 %v305, 1.442695
        %v313 = vpow.pop %v312
        %v314 = vadd.f32 %v307, 1.0
        %v315 = vlog2.pop %v314
        %v316 = vmul.f32 %v315, 0.6931472
        %v317 = vmul.f32 -0.5, %v307
        %v318 = vadd.f32 %v317, 1.0
        %v319 = vmul.f32 %v318, %v307
        %v320 = vand.u32 2147483647, %v307
        %vm321 = vcmp.lt.f32.partialorder %v320, 0.0004427343
        %v322 = vsel %vm321, %v319, %v316
        %v323 = vadd.f32 %v309, 1.0
        %v324 = vlog2.pop %v323
        %v325 = vmul.f32 %v324, 0.6931472
        %v326 = vmul.f32 -0.5, %v309
        %v327 = vadd.f32 %v326, 1.0
        %v328 = vmul.f32 %v327, %v309
        %v329 = vand.u32 2147483647, %v309
        %vm330 = vcmp.lt.f32.partialorder %v329, 0.0004427343
        %v331 = vsel %vm330, %v328, %v325
        %v332 = vadd.f32 %v311, 1.0
        %v333 = vlog2.pop %v332
        %v334 = vmul.f32 %v333, 0.6931472
        %v335 = vmul.f32 -0.5, %v311
        %v336 = vadd.f32 %v335, 1.0
        %v337 = vmul.f32 %v336, %v311
        %v338 = vand.u32 2147483647, %v311
        %vm339 = vcmp.lt.f32.partialorder %v338, 0.0004427343
        %v340 = vsel %vm339, %v337, %v334
        %v341 = vadd.f32 %v313, 1.0
        %v342 = vlog2.pop %v341
        %v343 = vmul.f32 %v342, 0.6931472
        %v344 = vmul.f32 -0.5, %v313
        %v345 = vadd.f32 %v344, 1.0
        %v346 = vmul.f32 %v345, %v313
        %v347 = vand.u32 2147483647, %v313
        %vm348 = vcmp.lt.f32.partialorder %v347, 0.0004427343
        %v349 = vsel %vm348, %v346, %v343
        %v350 = vadd.f32 %v294, %v322
        %v351 = vadd.f32 %v295, %v331
        %v352 = vadd.f32 %v296, %v340
        %v353 = vadd.f32 %v297, %v349
        %v354 = vstv %s243
        %v355 = vadd.s32 %v354, %v255
        %v356 = vadd.s32 %v354, %v256
        %v357 = vadd.s32 %v354, %v257
        %v358 = vadd.s32 %v354, %v258
        %vm359 = vcmp.lt.s32.totalorder %v355, 8192
        %vm360 = vcmp.lt.s32.totalorder %v356, 8192
        %vm361 = vcmp.lt.s32.totalorder %v357, 8192
        %vm362 = vcmp.lt.s32.totalorder %v358, 8192
        %v363 = vsel %vm359, %v350, 0.0
        %v364 = vsel %vm360, %v351, 0.0
        %v365 = vsel %vm361, %v352, 0.0
        %v366 = vsel %vm362, %v353, 0.0
        %v367 = vld [vmem:[%s240] sm:$0xff]
        %v368 = vadd.f32 %v363, %v364
        %v369 = vadd.f32 %v368, %v365
        %v370 = vadd.f32 %v369, %v366
        %v371 = vadd.f32 %v367, %v370
        %372 = vst [vmem:[%s240] sm:$0xff] %v371
        %p373 = scmp.lt.s32.totalorder %s22, 1
        %s374 = scalar_select %p373, %s22, 1
        %s375 = smul.addr %s374, 8
        %s376 = scalar_lea.vmem %s2, %s375
        %s377 = sand.u32 %s108, 1
        %s378 = scalar_lea.sflag [#allocation3], %s377
        %s379 = sand.u32 %s108, 1
        %s380 = smul.addr %s379, 8
        %s381 = scalar_lea.vmem [#allocation2], %s380
        %s382 = sand.u32 %s134, 1
        %s383 = scalar_lea.sflag [#allocation5], %s382
        %s384 = sand.u32 %s134, 1
        %s385 = smul.addr %s384, 8
        %s386 = scalar_lea.vmem [#allocation4], %s385
        // Predicated region
        $region29: #{_device_bce_and_binarize.1} parent=27 // pred_check
          %p387 = pneg %p92
        $region30: #{_device_bce_and_binarize.1} parent=27 // pred_check_branch
          %389 = sbr.rel (%p387) target = $region32
        $region31: #{_device_bce_and_binarize.1} parent=27 // pred_region
          _
        $region32: #{_device_bce_and_binarize.1} parent=27 // pred_fallthru
          _
        // Predicated region
        $region33: #{_device_bce_and_binarize.1} parent=27 // pred_check
          %p390 = pneg %p118
        $region34: #{_device_bce_and_binarize.1} parent=27 // pred_check_branch
          %392 = sbr.rel (%p390) target = $region36
        $region35: #{_device_bce_and_binarize.1} parent=27 // pred_region
          %s394 = ssub.s32 128, 128
          %395 = vsyncadd %s378, %s394
          %s396 = smul.addr %s22, 128
          %s397 = scalar_lea.hbm %s3, %s396
          %s399 = sshll.u32 %s381, 4
          %s400 = int_to_ptr.vmem [resolvable:$true] %s399
          %402 = dma.vmem_to_hbm [thread:$0]  %s400, 128, %s397, %s378
        $region36: #{_device_bce_and_binarize.1} parent=27 // pred_fallthru
          _
        // Predicated region
        $region37: #{_device_bce_and_binarize.1} parent=27 // pred_check
          %p403 = pneg %p144
        $region38: #{_device_bce_and_binarize.1} parent=27 // pred_check_branch
          %405 = sbr.rel (%p403) target = $region40
        $region39: #{_device_bce_and_binarize.1} parent=27 // pred_region
          %s407 = ssub.s32 128, 128
          %408 = vsyncadd %s383, %s407
          %s409 = smul.addr %s22, 128
          %s410 = scalar_lea.hbm %s4, %s409
          %s412 = sshll.u32 %s386, 4
          %s413 = int_to_ptr.vmem [resolvable:$true] %s412
          %415 = dma.vmem_to_hbm [thread:$0]  %s413, 128, %s410, %s383
        $region40: #{_device_bce_and_binarize.1} parent=27 // pred_fallthru
          _
      $region28: #{_device_bce_and_binarize.1} parent=5 // pred_fallthru
        _
      %p416 = scmp.le.s32.totalorder 2, %s17
      // Predicated region
      $region41: #{_device_bce_and_binarize.1} parent=5 // pred_check
        %p417 = pneg %p416
      $region42: #{_device_bce_and_binarize.1} parent=5 // pred_check_branch
        %419 = sbr.rel (%p417) target = $region44
      $region43: #{_device_bce_and_binarize.1} parent=5 // pred_region
        %s420 = ssub.s32 %s17, 2
        // Predicated region
        $region45: #{_device_bce_and_binarize.1} parent=43 // pred_check
          %p421 = pneg %p98
        $region46: #{_device_bce_and_binarize.1} parent=43 // pred_check_branch
          %423 = sbr.rel (%p421) target = $region48
        $region47: #{_device_bce_and_binarize.1} parent=43 // pred_region
          %p424 = scmp.lt.s32.totalorder %s23, 1
          %s425 = scalar_select %p424, %s23, 1
          %s426 = smul.addr %s425, 8
          %s427 = scalar_lea.vmem %s2, %s426
        $region48: #{_device_bce_and_binarize.1} parent=43 // pred_fallthru
          _
        // Predicated region
        $region49: #{_device_bce_and_binarize.1} parent=43 // pred_check
          %p428 = pneg %p124
        $region50: #{_device_bce_and_binarize.1} parent=43 // pred_check_branch
          %430 = sbr.rel (%p428) target = $region52
        $region51: #{_device_bce_and_binarize.1} parent=43 // pred_region
          %s431 = sand.u32 %s109, 1
          %s432 = scalar_lea.sflag [#allocation3], %s431
          %s433 = sand.u32 %s109, 1
          %s434 = smul.addr %s433, 8
          %s435 = scalar_lea.vmem [#allocation2], %s434
          %436 = dma.done %s432, 128
        $region52: #{_device_bce_and_binarize.1} parent=43 // pred_fallthru
          _
        // Predicated region
        $region53: #{_device_bce_and_binarize.1} parent=43 // pred_check
          %p437 = pneg %p150
        $region54: #{_device_bce_and_binarize.1} parent=43 // pred_check_branch
          %439 = sbr.rel (%p437) target = $region56
        $region55: #{_device_bce_and_binarize.1} parent=43 // pred_region
          %s440 = sand.u32 %s135, 1
          %s441 = scalar_lea.sflag [#allocation5], %s440
          %s442 = sand.u32 %s135, 1
          %s443 = smul.addr %s442, 8
          %s444 = scalar_lea.vmem [#allocation4], %s443
          %445 = dma.done %s441, 128
        $region56: #{_device_bce_and_binarize.1} parent=43 // pred_fallthru
          _
      $region44: #{_device_bce_and_binarize.1} parent=5 // pred_fallthru
        _
    $region6: #{_device_bce_and_binarize.1} parent=1 // loop_footer
      %s21 = sadd.s32 1, %s17
    $region7: #{_device_bce_and_binarize.1} parent=1 // loop_footer_branch
      %16 = sbr.rel target = $region3
    $region8: #{_device_bce_and_binarize.1} parent=1 // loop_exit
      _
    %446 = vsyncpa [#allocation3], 1
    %s447 = scalar_lea.sflag [#allocation3], 1
    %448 = vsyncpa %s447, 1
    %449 = vsyncpa [#allocation5], 1
    %s450 = scalar_lea.sflag [#allocation5], 1
    %451 = vsyncpa %s450, 1

</llo_original>
